<compile_context>
chip_gen: v6e
topology: v6e:2x2x1
jax: 0.10.0
libtpu: 0.0.40
codegen_flags: <defaults>
</compile_context>

<pallas_src>
import functools
import math

import jax
import jax.numpy as jnp
from jax import lax
from jax.experimental import pallas as pl
from jax.experimental.pallas import tpu as pltpu


def _round_up(x: int, m: int) -> int:
    return ((x + m - 1) // m) * m


def _pick_tile_e(E: int) -> int:
    # Lane-dense (multiple-of-128) E tile when possible; otherwise take the
    # full E extent as a single block (always legal).
    # TODO(synk): for E not a multiple of 128, pad the table's E dim upstream
    # so output stores stay unmasked (lane-dense).
    if E % 128 != 0:
        return E
    for cand in (512, 256, 128):
        if E % cand == 0:
            return cand
    return E


# ----------------------------------------------------------------------------
# Path 1: small vocab — one-hot @ table on the MXU (exact for integer ids).
# ----------------------------------------------------------------------------
def _onehot_embed_kernel(tok_ref, table_ref, out_ref, *, scale):
    # tok_ref:   (TN, 1)   int32  token ids for this token tile
    # table_ref: (Vp, TE)  f32    vocab-padded table, E-tile j
    # out_ref:   (TN, TE)  f32
    tok = tok_ref[...]                                      # (TN, 1)
    tn = tok.shape[0]
    vp = table_ref.shape[0]
    vocab_ids = lax.broadcasted_iota(jnp.int32, (tn, vp), 1)
    # Fold sqrt(E) into the one-hot so the scaling rides through the MXU for
    # free (no separate (TN, TE) VPU multiply pass).
    onehot = jnp.where(tok == vocab_ids, scale, 0.0).astype(table_ref.dtype)
    out_ref[...] = jnp.dot(
        onehot, table_ref[...], preferred_element_type=jnp.float32
    ).astype(out_ref.dtype)
    # Note: out-of-range / negative ids select no row -> zero output row
    # (nn.Embedding would raise instead).


def _token_embedding_onehot(tok_flat, table, *, tile_tokens, tile_e):
    Np = tok_flat.shape[0]                       # padded token count
    V, E = table.shape
    Vp = _round_up(V, 128)                       # 128-aligned contraction dim
    if Vp != V:
        table = jnp.pad(table, ((0, Vp - V), (0, 0)))
    scale = math.sqrt(float(E))

    num_t = Np // tile_tokens
    num_e = E // tile_e

    # Rough VMEM footprint (double-buffered tiles + one-hot intermediate),
    # with 2x headroom, clamped to what is portable across v5e/v6e/v7x.
    vmem_bytes = (2 * Vp * tile_e * 4            # table tile (double buffered)
                  + 2 * tile_tokens * tile_e * 4  # output tile
                  + 2 * tile_tokens * 4           # token tile
                  + tile_tokens * Vp * 4)         # one-hot intermediate
    vmem_limit = int(min(max(2 * vmem_bytes, 32 * 1024 * 1024),
                         64 * 1024 * 1024))

    return pl.pallas_call(
        functools.partial(_onehot_embed_kernel, scale=scale),
        out_shape=jax.ShapeDtypeStruct((Np, E), table.dtype),
        grid=(num_t, num_e),
        in_specs=[
            pl.BlockSpec((tile_tokens, 1), lambda i, j: (i, 0)),  # token ids
            pl.BlockSpec((Vp, tile_e), lambda i, j: (0, j)),      # table E-tile
        ],
        out_specs=pl.BlockSpec((tile_tokens, tile_e), lambda i, j: (i, j)),
        compiler_params=pltpu.CompilerParams(
            dimension_semantics=("parallel", "parallel"),
            vmem_limit_bytes=vmem_limit),
    )(tok_flat.reshape(Np, 1), table)


# ----------------------------------------------------------------------------
# Path 2: realistic vocab — true HBM row gather via manual DMA.
# ----------------------------------------------------------------------------
def _gather_embed_kernel(ids_ref, table_hbm, out_ref, buf, sem, *,
                         tile_tokens, vocab, scale):
    # ids_ref:   (Np,)  int32 in SMEM (scalar-prefetched token ids)
    # table_hbm: (V, E) f32 ref left in HBM (memory_space=pl.ANY)
    # out_ref:   (TN, E) f32 VMEM output tile
    # buf:       (TN, E) f32 VMEM staging buffer
    # sem:       DMA semaphore
    base = pl.program_id(0) * tile_tokens

    @pl.loop(0, tile_tokens)
    def _issue(j):
        row = jnp.clip(ids_ref[base + j], 0, vocab - 1)
        pltpu.make_async_copy(
            table_hbm.at[pl.ds(row, 1), :],
            buf.at[pl.ds(j, 1), :],
            sem,
        ).start()

    @pl.loop(0, tile_tokens)
    def _drain(j):
        # Waits only depend on the semaphore + per-copy byte count.
        pltpu.make_async_copy(
            table_hbm.at[pl.ds(0, 1), :],
            buf.at[pl.ds(0, 1), :],
            sem,
        ).wait()

    out_ref[...] = (buf[...] * scale).astype(out_ref.dtype)


def _token_embedding_gather(tok_flat, table, *, tile_tokens):
    Np = tok_flat.shape[0]
    V, E = table.shape
    scale = math.sqrt(float(E))
    num_t = Np // tile_tokens

    grid_spec = pltpu.PrefetchScalarGridSpec(
        num_scalar_prefetch=1,
        grid=(num_t,),
        in_specs=[pl.BlockSpec(memory_space=pl.ANY)],        # table stays put
        out_specs=pl.BlockSpec((tile_tokens, E), lambda i, ids: (i, 0)),
        scratch_shapes=[
            pltpu.VMEM((tile_tokens, E), table.dtype),       # gather staging
            pltpu.SemaphoreType.DMA,                          # one DMA sem
        ],
    )
    return pl.pallas_call(
        functools.partial(_gather_embed_kernel, tile_tokens=tile_tokens,
                          vocab=V, scale=scale),
        out_shape=jax.ShapeDtypeStruct((Np, E), table.dtype),
        grid_spec=grid_spec,
        compiler_params=pltpu.CompilerParams(
            dimension_semantics=("parallel",)),
    )(tok_flat, table)


# ----------------------------------------------------------------------------
# Public wrapper (matches TokenEmbedding.forward)
# ----------------------------------------------------------------------------
def token_embedding(tokens, table, *, tile_tokens=256, onehot_vocab_limit=512):
    """tokens: (B, S) int, table: (V, E) f32 -> (B, S, E) f32 = table[tokens]*sqrt(E)."""
    B, S = tokens.shape
    V, E = table.shape
    N = B * S

    # Keep the token tile 128-aligned (MXU native dim on v5e; 256 default also
    # fills the v6e/v7x 256x256 MXU) and pad N instead of asserting.
    tile_tokens = _round_up(max(int(tile_tokens), 128), 128)
    Np = _round_up(max(N, tile_tokens), tile_tokens)

    tok_flat = tokens.reshape(N).astype(jnp.int32)
    if Np != N:
        tok_flat = jnp.pad(tok_flat, (0, Np - N))   # pad with id 0; sliced off

    if V <= onehot_vocab_limit:
        out = _token_embedding_onehot(tok_flat, table,
                                      tile_tokens=tile_tokens,
                                      tile_e=_pick_tile_e(E))
    else:
        out = _token_embedding_gather(tok_flat, table,
                                      tile_tokens=tile_tokens)

    return out[:N].reshape(B, S, E)


if __name__ == "__main__":
    B, S, V, E = 2, 8, 64, 128
    key = jax.random.PRNGKey(0)
    k_tok, k_emb, k_tok2, k_emb2 = jax.random.split(key, 4)

    # --- small-vocab path (one-hot @ table on the MXU) ---------------------
    tokens = jax.random.randint(k_tok, (B, S), minval=0, maxval=V,
                                dtype=jnp.int32)
    table = jax.random.normal(k_emb, (V, E), dtype=jnp.float32)  # ~N(0,1) init
    out = jax.block_until_ready(token_embedding(tokens, table))
    ref = table[tokens] * math.sqrt(float(E))
    assert out.shape == (B, S, E), out.shape
    assert out.dtype == jnp.float32, out.dtype
    assert jnp.allclose(out, ref, atol=1e-5, rtol=1e-5), "one-hot path mismatch"

    # --- realistic-vocab path (HBM row gather via manual DMA) --------------
    V2 = 2048
    tokens2 = jax.random.randint(k_tok2, (B, S), minval=0, maxval=V2,
                                 dtype=jnp.int32)
    table2 = jax.random.normal(k_emb2, (V2, E), dtype=jnp.float32)
    out2 = jax.block_until_ready(token_embedding(tokens2, table2))
    ref2 = table2[tokens2] * math.sqrt(float(E))
    assert out2.shape == (B, S, E), out2.shape
    assert jnp.allclose(out2, ref2, atol=1e-5, rtol=1e-5), "gather path mismatch"

    print("KERNEL_OK")
</pallas_src>

<mosaic_0001>
module attributes {stable_mosaic.version = 11 : i64} {
  func.func @_onehot_embed_kernel(%arg0: i32, %arg1: i32, %arg2: memref<256x1xi32, #tpu.memory_space<vmem>>, %arg3: memref<128x128xf32, #tpu.memory_space<vmem>>, %arg4: memref<256x128xf32, #tpu.memory_space<vmem>>) attributes {dimension_semantics = [#tpu.dimension_semantics<parallel>, #tpu.dimension_semantics<parallel>], iteration_bounds = array<i64: 1, 1>, scalar_prefetch = 0 : i64, scratch_operands = 0 : i64, tpu.core_type = #tpu.core_type<tc>, window_params = [{transform_indices = @transform_0, window_bounds = array<i64: 256, 1>}, {transform_indices = @transform_1, window_bounds = array<i64: 128, 128>}, {transform_indices = @transform_2, window_bounds = array<i64: 256, 128>}]} {
    %c0 = arith.constant 0 : index
    %c0_0 = arith.constant 0 : index
    %0 = vector.load %arg2[%c0, %c0_0] : memref<256x1xi32, #tpu.memory_space<vmem>>, vector<256x1xi32>
    %1 = tpu.iota {dimensions = array<i32: 1>} : vector<256x128xi32>
    %2 = vector.broadcast %0 : vector<256x1xi32> to vector<256x128xi32>
    %3 = arith.cmpi eq, %2, %1 : vector<256x128xi32>
    %cst = arith.constant 11.3137083 : f32
    %cst_1 = arith.constant 0.000000e+00 : f32
    %4 = vector.broadcast %cst : f32 to vector<256x128xf32>
    %5 = vector.broadcast %cst_1 : f32 to vector<256x128xf32>
    %6 = arith.select %3, %4, %5 : vector<256x128xi1>, vector<256x128xf32>
    %c0_2 = arith.constant 0 : index
    %c0_3 = arith.constant 0 : index
    %7 = vector.load %arg3[%c0_2, %c0_3] : memref<128x128xf32, #tpu.memory_space<vmem>>, vector<128x128xf32>
    %cst_4 = arith.constant dense<0.000000e+00> : vector<256x128xf32>
    %8 = tpu.matmul %6, %7, %cst_4 {dimension_numbers = #tpu.dot_dimension_numbers<[1], [0], [0], [1], [0, 0, 1, 1], [], []>} : vector<256x128xf32>, vector<128x128xf32>, vector<256x128xf32> -> vector<256x128xf32>
    %c0_5 = arith.constant 0 : index
    %c0_6 = arith.constant 0 : index
    %9 = vector.load %arg4[%c0_5, %c0_6] : memref<256x128xf32, #tpu.memory_space<vmem>>, vector<256x128xf32>
    tpu.vector_store %arg4[%c0_5, %c0_6], %8 {strides = array<i32>} : memref<256x128xf32, #tpu.memory_space<vmem>>, vector<256x128xf32>,
    return
  }
  func.func @transform_0(%arg0: i32, %arg1: i32) -> (i32, i32) {
    %c0_i32 = arith.constant 0 : i32
    %c0_i32_0 = arith.constant 0 : i32
    return %arg0, %c0_i32 : i32, i32
  }
  func.func @transform_1(%arg0: i32, %arg1: i32) -> (i32, i32) {
    %c0_i32 = arith.constant 0 : i32
    %c0_i32_0 = arith.constant 0 : i32
    return %c0_i32, %arg1 : i32, i32
  }
  func.func @transform_2(%arg0: i32, %arg1: i32) -> (i32, i32) {
    %c0_i32 = arith.constant 0 : i32
    return %arg0, %arg1 : i32, i32
  }
}

</mosaic_0001>

<llo_original>
// kernel: tpu_custom_call.1
$region0: #{tpu_custom_call.1}
  #allocation0 [shape = 'u32[]', space=smem, size = 0x4, offset = 0x4, fixed_abs, tag = 'smem constant byte address 0x4 - core index']
  #allocation1 [shape = 'u32[144,128]{1,0:T(1,128)}', space=vmem, size = 0x12000, scoped, tag = 'internal scratch']
  %s0 = inlined_call_operand.vmem [shape: s32[256,1], index: 0, kind: input, shape index: {}]
  %s1 = inlined_call_operand.vmem [shape: f32[128,128], index: 1, kind: input, shape index: {}]
  %s2 = inlined_call_operand.hbm [shape: f32[256,128], index: 2, kind: output, shape index: {}]
  %s3 = sld [smem:[#allocation0]]
  $region18: #{tpu_custom_call.1} parent=0
    _
  %s5 = ssub.s32 1, %s3
  %s6 = scalar_select 0, %s5, %s3
  $region1: #{tpu_custom_call.1} parent=0
    #allocation2 [shape = 'u8[131072]{0}', space=vmem, size = 0x20000, scoped, tag = 'output window, operand 0, single buffered']
    #allocation3 [shape = 's32[1]{0}', space=sflag, size = 0x4, scoped, tag = 'scoped memory for tpu_custom_call.1']
    %7 = vsyncpa [#allocation3], 0
    // Predicated region
    $region2: #{tpu_custom_call.1} parent=1 // pred_check
      _
    $region3: #{tpu_custom_call.1} parent=1 // pred_check_branch
      %9 = sbr.rel (0) target = $region5
    $region4: #{tpu_custom_call.1} parent=1 // pred_region
      _
    $region5: #{tpu_custom_call.1} parent=1 // pred_fallthru
      _
    // Predicated region
    $region6: #{tpu_custom_call.1} parent=1 // pred_check
      _
    $region7: #{tpu_custom_call.1} parent=1 // pred_check_branch
      %11 = sbr.rel (0) target = $region9
    $region8: #{tpu_custom_call.1} parent=1 // pred_region
      _
    $region9: #{tpu_custom_call.1} parent=1 // pred_fallthru
      _
    %v12 = vld [vmem:[%s0] sm:$0xff]
    %v13 = vld [vmem:[%s0 + $0x8] sm:$0xff]
    %v14 = vld [vmem:[%s0 + $0x10] sm:$0xff]
    %v15 = vld [vmem:[%s0 + $0x18] sm:$0xff]
    %v16 = vld [vmem:[%s0 + $0x20] sm:$0xff]
    %v17 = vld [vmem:[%s0 + $0x28] sm:$0xff]
    %v18 = vld [vmem:[%s0 + $0x30] sm:$0xff]
    %v19 = vld [vmem:[%s0 + $0x38] sm:$0xff]
    %v20 = vld [vmem:[%s0 + $0x40] sm:$0xff]
    %v21 = vld [vmem:[%s0 + $0x48] sm:$0xff]
    %v22 = vld [vmem:[%s0 + $0x50] sm:$0xff]
    %v23 = vld [vmem:[%s0 + $0x58] sm:$0xff]
    %v24 = vld [vmem:[%s0 + $0x60] sm:$0xff]
    %v25 = vld [vmem:[%s0 + $0x68] sm:$0xff]
    %v26 = vld [vmem:[%s0 + $0x70] sm:$0xff]
    %v27 = vld [vmem:[%s0 + $0x78] sm:$0xff]
    %v28 = vld [vmem:[%s0 + $0x80] sm:$0xff]
    %v29 = vld [vmem:[%s0 + $0x88] sm:$0xff]
    %v30 = vld [vmem:[%s0 + $0x90] sm:$0xff]
    %v31 = vld [vmem:[%s0 + $0x98] sm:$0xff]
    %v32 = vld [vmem:[%s0 + $0xa0] sm:$0xff]
    %v33 = vld [vmem:[%s0 + $0xa8] sm:$0xff]
    %v34 = vld [vmem:[%s0 + $0xb0] sm:$0xff]
    %v35 = vld [vmem:[%s0 + $0xb8] sm:$0xff]
    %v36 = vld [vmem:[%s0 + $0xc0] sm:$0xff]
    %v37 = vld [vmem:[%s0 + $0xc8] sm:$0xff]
    %v38 = vld [vmem:[%s0 + $0xd0] sm:$0xff]
    %v39 = vld [vmem:[%s0 + $0xd8] sm:$0xff]
    %v40 = vld [vmem:[%s0 + $0xe0] sm:$0xff]
    %v41 = vld [vmem:[%s0 + $0xe8] sm:$0xff]
    %v42 = vld [vmem:[%s0 + $0xf0] sm:$0xff]
    %v43 = vld [vmem:[%s0 + $0xf8] sm:$0xff]
    %v44 = vlaneseq
    %v45 = vand.u32 %v44, 127
    %46 = vset.pattern.permute.xlu0 0
    %47 = vperm.xlu0 %46, %v12
    %v48 = vpop.permute.xlu0 %47
    %49 = vset.pattern.permute.xlu0 0
    %50 = vperm.xlu0 %49, %v13
    %v51 = vpop.permute.xlu0 %50
    %52 = vset.pattern.permute.xlu0 0
    %53 = vperm.xlu0 %52, %v14
    %v54 = vpop.permute.xlu0 %53
    %55 = vset.pattern.permute.xlu0 0
    %56 = vperm.xlu0 %55, %v15
    %v57 = vpop.permute.xlu0 %56
    %58 = vset.pattern.permute.xlu0 0
    %59 = vperm.xlu0 %58, %v16
    %v60 = vpop.permute.xlu0 %59
    %61 = vset.pattern.permute.xlu0 0
    %62 = vperm.xlu0 %61, %v17
    %v63 = vpop.permute.xlu0 %62
    %64 = vset.pattern.permute.xlu0 0
    %65 = vperm.xlu0 %64, %v18
    %v66 = vpop.permute.xlu0 %65
    %67 = vset.pattern.permute.xlu0 0
    %68 = vperm.xlu0 %67, %v19
    %v69 = vpop.permute.xlu0 %68
    %70 = vset.pattern.permute.xlu0 0
    %71 = vperm.xlu0 %70, %v20
    %v72 = vpop.permute.xlu0 %71
    %73 = vset.pattern.permute.xlu0 0
    %74 = vperm.xlu0 %73, %v21
    %v75 = vpop.permute.xlu0 %74
    %76 = vset.pattern.permute.xlu0 0
    %77 = vperm.xlu0 %76, %v22
    %v78 = vpop.permute.xlu0 %77
    %79 = vset.pattern.permute.xlu0 0
    %80 = vperm.xlu0 %79, %v23
    %v81 = vpop.permute.xlu0 %80
    %82 = vset.pattern.permute.xlu0 0
    %83 = vperm.xlu0 %82, %v24
    %v84 = vpop.permute.xlu0 %83
    %85 = vset.pattern.permute.xlu0 0
    %86 = vperm.xlu0 %85, %v25
    %v87 = vpop.permute.xlu0 %86
    %88 = vset.pattern.permute.xlu0 0
    %89 = vperm.xlu0 %88, %v26
    %v90 = vpop.permute.xlu0 %89
    %91 = vset.pattern.permute.xlu0 0
    %92 = vperm.xlu0 %91, %v27
    %v93 = vpop.permute.xlu0 %92
    %94 = vset.pattern.permute.xlu0 0
    %95 = vperm.xlu0 %94, %v28
    %v96 = vpop.permute.xlu0 %95
    %97 = vset.pattern.permute.xlu0 0
    %98 = vperm.xlu0 %97, %v29
    %v99 = vpop.permute.xlu0 %98
    %100 = vset.pattern.permute.xlu0 0
    %101 = vperm.xlu0 %100, %v30
    %v102 = vpop.permute.xlu0 %101
    %103 = vset.pattern.permute.xlu0 0
    %104 = vperm.xlu0 %103, %v31
    %v105 = vpop.permute.xlu0 %104
    %106 = vset.pattern.permute.xlu0 0
    %107 = vperm.xlu0 %106, %v32
    %v108 = vpop.permute.xlu0 %107
    %109 = vset.pattern.permute.xlu0 0
    %110 = vperm.xlu0 %109, %v33
    %v111 = vpop.permute.xlu0 %110
    %112 = vset.pattern.permute.xlu0 0
    %113 = vperm.xlu0 %112, %v34
    %v114 = vpop.permute.xlu0 %113
    %115 = vset.pattern.permute.xlu0 0
    %116 = vperm.xlu0 %115, %v35
    %v117 = vpop.permute.xlu0 %116
    %118 = vset.pattern.permute.xlu0 0
    %119 = vperm.xlu0 %118, %v36
    %v120 = vpop.permute.xlu0 %119
    %121 = vset.pattern.permute.xlu0 0
    %122 = vperm.xlu0 %121, %v37
    %v123 = vpop.permute.xlu0 %122
    %124 = vset.pattern.permute.xlu0 0
    %125 = vperm.xlu0 %124, %v38
    %v126 = vpop.permute.xlu0 %125
    %127 = vset.pattern.permute.xlu0 0
    %128 = vperm.xlu0 %127, %v39
    %v129 = vpop.permute.xlu0 %128
    %130 = vset.pattern.permute.xlu0 0
    %131 = vperm.xlu0 %130, %v40
    %v132 = vpop.permute.xlu0 %131
    %133 = vset.pattern.permute.xlu0 0
    %134 = vperm.xlu0 %133, %v41
    %v135 = vpop.permute.xlu0 %134
    %136 = vset.pattern.permute.xlu0 0
    %137 = vperm.xlu0 %136, %v42
    %v138 = vpop.permute.xlu0 %137
    %139 = vset.pattern.permute.xlu0 0
    %140 = vperm.xlu0 %139, %v43
    %v141 = vpop.permute.xlu0 %140
    %vm142 = vcmp.eq.s32.totalorder %v48, %v45
    %vm143 = vcmp.eq.s32.totalorder %v51, %v45
    %vm144 = vcmp.eq.s32.totalorder %v54, %v45
    %vm145 = vcmp.eq.s32.totalorder %v57, %v45
    %vm146 = vcmp.eq.s32.totalorder %v60, %v45
    %vm147 = vcmp.eq.s32.totalorder %v63, %v45
    %vm148 = vcmp.eq.s32.totalorder %v66, %v45
    %vm149 = vcmp.eq.s32.totalorder %v69, %v45
    %vm150 = vcmp.eq.s32.totalorder %v72, %v45
    %vm151 = vcmp.eq.s32.totalorder %v75, %v45
    %vm152 = vcmp.eq.s32.totalorder %v78, %v45
    %vm153 = vcmp.eq.s32.totalorder %v81, %v45
    %vm154 = vcmp.eq.s32.totalorder %v84, %v45
    %vm155 = vcmp.eq.s32.totalorder %v87, %v45
    %vm156 = vcmp.eq.s32.totalorder %v90, %v45
    %vm157 = vcmp.eq.s32.totalorder %v93, %v45
    %vm158 = vcmp.eq.s32.totalorder %v96, %v45
    %vm159 = vcmp.eq.s32.totalorder %v99, %v45
    %vm160 = vcmp.eq.s32.totalorder %v102, %v45
    %vm161 = vcmp.eq.s32.totalorder %v105, %v45
    %vm162 = vcmp.eq.s32.totalorder %v108, %v45
    %vm163 = vcmp.eq.s32.totalorder %v111, %v45
    %vm164 = vcmp.eq.s32.totalorder %v114, %v45
    %vm165 = vcmp.eq.s32.totalorder %v117, %v45
    %vm166 = vcmp.eq.s32.totalorder %v120, %v45
    %vm167 = vcmp.eq.s32.totalorder %v123, %v45
    %vm168 = vcmp.eq.s32.totalorder %v126, %v45
    %vm169 = vcmp.eq.s32.totalorder %v129, %v45
    %vm170 = vcmp.eq.s32.totalorder %v132, %v45
    %vm171 = vcmp.eq.s32.totalorder %v135, %v45
    %vm172 = vcmp.eq.s32.totalorder %v138, %v45
    %vm173 = vcmp.eq.s32.totalorder %v141, %v45
    %v174 = vsel %vm142, 11.313708, 0.0
    %v175 = vsel %vm143, 11.313708, 0.0
    %v176 = vsel %vm144, 11.313708, 0.0
    %v177 = vsel %vm145, 11.313708, 0.0
    %v178 = vsel %vm146, 11.313708, 0.0
    %v179 = vsel %vm147, 11.313708, 0.0
    %v180 = vsel %vm148, 11.313708, 0.0
    %v181 = vsel %vm149, 11.313708, 0.0
    %v182 = vsel %vm150, 11.313708, 0.0
    %v183 = vsel %vm151, 11.313708, 0.0
    %v184 = vsel %vm152, 11.313708, 0.0
    %v185 = vsel %vm153, 11.313708, 0.0
    %v186 = vsel %vm154, 11.313708, 0.0
    %v187 = vsel %vm155, 11.313708, 0.0
    %v188 = vsel %vm156, 11.313708, 0.0
    %v189 = vsel %vm157, 11.313708, 0.0
    %v190 = vsel %vm158, 11.313708, 0.0
    %v191 = vsel %vm159, 11.313708, 0.0
    %v192 = vsel %vm160, 11.313708, 0.0
    %v193 = vsel %vm161, 11.313708, 0.0
    %v194 = vsel %vm162, 11.313708, 0.0
    %v195 = vsel %vm163, 11.313708, 0.0
    %v196 = vsel %vm164, 11.313708, 0.0
    %v197 = vsel %vm165, 11.313708, 0.0
    %v198 = vsel %vm166, 11.313708, 0.0
    %v199 = vsel %vm167, 11.313708, 0.0
    %v200 = vsel %vm168, 11.313708, 0.0
    %v201 = vsel %vm169, 11.313708, 0.0
    %v202 = vsel %vm170, 11.313708, 0.0
    %v203 = vsel %vm171, 11.313708, 0.0
    %v204 = vsel %vm172, 11.313708, 0.0
    %v205 = vsel %vm173, 11.313708, 0.0
    %v206 = vld [vmem:[%s1] sm:$0xff]
    %v207 = vld [vmem:[%s1 + $0x8] sm:$0xff]
    %v208 = vld [vmem:[%s1 + $0x10] sm:$0xff]
    %v209 = vld [vmem:[%s1 + $0x18] sm:$0xff]
    %v210 = vld [vmem:[%s1 + $0x20] sm:$0xff]
    %v211 = vld [vmem:[%s1 + $0x28] sm:$0xff]
    %v212 = vld [vmem:[%s1 + $0x30] sm:$0xff]
    %v213 = vld [vmem:[%s1 + $0x38] sm:$0xff]
    %v214 = vld [vmem:[%s1 + $0x40] sm:$0xff]
    %v215 = vld [vmem:[%s1 + $0x48] sm:$0xff]
    %v216 = vld [vmem:[%s1 + $0x50] sm:$0xff]
    %v217 = vld [vmem:[%s1 + $0x58] sm:$0xff]
    %v218 = vld [vmem:[%s1 + $0x60] sm:$0xff]
    %v219 = vld [vmem:[%s1 + $0x68] sm:$0xff]
    %v220 = vld [vmem:[%s1 + $0x70] sm:$0xff]
    %v221 = vld [vmem:[%s1 + $0x78] sm:$0xff]
    %222 = vmatprep.subr.mxu0 0.0
    %223 = vmatpush1.msra.mxu0 %v221
    %224 = vmatprep.subr.mxu0 0.0
    %225 = vmatpush1.msra.mxu0 %v220
    %226 = vmatprep.subr.mxu0 0.0
    %227 = vmatpush1.msra.mxu0 %v219
    %228 = vmatprep.subr.mxu0 0.0
    %229 = vmatpush1.msra.mxu0 %v218
    %230 = vmatprep.subr.mxu0 0.0
    %231 = vmatpush1.msra.mxu0 %v217
    %232 = vmatprep.subr.mxu0 0.0
    %233 = vmatpush1.msra.mxu0 %v216
    %234 = vmatprep.subr.mxu0 0.0
    %235 = vmatpush1.msra.mxu0 %v215
    %236 = vmatprep.subr.mxu0 0.0
    %237 = vmatpush1.msra.mxu0 %v214
    %238 = vmatprep.subr.mxu0 0.0
    %239 = vmatpush1.msra.mxu0 %v213
    %240 = vmatprep.subr.mxu0 0.0
    %241 = vmatpush1.msra.mxu0 %v212
    %242 = vmatprep.subr.mxu0 0.0
    %243 = vmatpush1.msra.mxu0 %v211
    %244 = vmatprep.subr.mxu0 0.0
    %245 = vmatpush1.msra.mxu0 %v210
    %246 = vmatprep.subr.mxu0 0.0
    %247 = vmatpush1.msra.mxu0 %v209
    %248 = vmatprep.subr.mxu0 0.0
    %249 = vmatpush1.msra.mxu0 %v208
    %250 = vmatprep.subr.mxu0 0.0
    %251 = vmatpush1.msra.mxu0 %v207
    %252 = vmatprep.subr.mxu0 0.0
    %253 = vmatpush1.msra.mxu0 %v206
    %254 = vmatprep.subr.mxu0 0.0
    %255 = vmatpush2.msra.mxu0 0.0
    %256 = vmatprep.subr.mxu0 0.0
    %257 = vmatpush2.msra.mxu0 0.0
    %258 = vmatprep.subr.mxu0 0.0
    %259 = vmatpush2.msra.mxu0 0.0
    %260 = vmatprep.subr.mxu0 0.0
    %261 = vmatpush2.msra.mxu0 0.0
    %262 = vmatprep.subr.mxu0 0.0
    %263 = vmatpush2.msra.mxu0 0.0
    %264 = vmatprep.subr.mxu0 0.0
    %265 = vmatpush2.msra.mxu0 0.0
    %266 = vmatprep.subr.mxu0 0.0
    %267 = vmatpush2.msra.mxu0 0.0
    %268 = vmatprep.subr.mxu0 0.0
    %269 = vmatpush2.msra.mxu0 0.0
    %270 = vmatprep.subr.mxu0 0.0
    %271 = vmatpush2.msra.mxu0 0.0
    %272 = vmatprep.subr.mxu0 0.0
    %273 = vmatpush2.msra.mxu0 0.0
    %274 = vmatprep.subr.mxu0 0.0
    %275 = vmatpush2.msra.mxu0 0.0
    %276 = vmatprep.subr.mxu0 0.0
    %277 = vmatpush2.msra.mxu0 0.0
    %278 = vmatprep.subr.mxu0 0.0
    %279 = vmatpush2.msra.mxu0 0.0
    %280 = vmatprep.subr.mxu0 0.0
    %281 = vmatpush2.msra.mxu0 0.0
    %282 = vmatprep.subr.mxu0 0.0
    %283 = vmatpush2.msra.mxu0 0.0
    %284 = vmatprep.subr.mxu0 0.0
    %285 = vmatpush2.msra.mxu0 0.0
    %286 = vmatprep.mubr.f32.mxu0 0.0
    %287 = vmatmul.mubr.f32.gmra.mxu0 %v174
    %v288 = vpop.f32.mrf.mxu0
    %v289 = vadd.f32 0.0, %v288
    %v290 = vpop.f32.mrf.mxu0
    %291 = vmatprep.mubr.f32.mxu0 0.0
    %292 = vmatmul.mubr.f32.gmra.mxu0 %v175
    %v293 = vpop.f32.mrf.mxu0
    %v294 = vadd.f32 0.0, %v293
    %v295 = vpop.f32.mrf.mxu0
    %296 = vmatprep.mubr.f32.mxu0 0.0
    %297 = vmatmul.mubr.f32.gmra.mxu0 %v176
    %v298 = vpop.f32.mrf.mxu0
    %v299 = vadd.f32 0.0, %v298
    %v300 = vpop.f32.mrf.mxu0
    %301 = vmatprep.mubr.f32.mxu0 0.0
    %302 = vmatmul.mubr.f32.gmra.mxu0 %v177
    %v303 = vpop.f32.mrf.mxu0
    %v304 = vadd.f32 0.0, %v303
    %v305 = vpop.f32.mrf.mxu0
    %306 = vmatprep.mubr.f32.mxu0 0.0
    %307 = vmatmul.mubr.f32.gmra.mxu0 %v178
    %v308 = vpop.f32.mrf.mxu0
    %v309 = vadd.f32 0.0, %v308
    %v310 = vpop.f32.mrf.mxu0
    %311 = vmatprep.mubr.f32.mxu0 0.0
    %312 = vmatmul.mubr.f32.gmra.mxu0 %v179
    %v313 = vpop.f32.mrf.mxu0
    %v314 = vadd.f32 0.0, %v313
    %v315 = vpop.f32.mrf.mxu0
    %316 = vmatprep.mubr.f32.mxu0 0.0
    %317 = vmatmul.mubr.f32.gmra.mxu0 %v180
    %v318 = vpop.f32.mrf.mxu0
    %v319 = vadd.f32 0.0, %v318
    %v320 = vpop.f32.mrf.mxu0
    %321 = vmatprep.mubr.f32.mxu0 0.0
    %322 = vmatmul.mubr.f32.gmra.mxu0 %v181
    %v323 = vpop.f32.mrf.mxu0
    %v324 = vadd.f32 0.0, %v323
    %v325 = vpop.f32.mrf.mxu0
    %326 = vmatprep.mubr.f32.mxu0 0.0
    %327 = vmatmul.mubr.f32.gmra.mxu0 %v182
    %v328 = vpop.f32.mrf.mxu0
    %v329 = vadd.f32 0.0, %v328
    %v330 = vpop.f32.mrf.mxu0
    %331 = vmatprep.mubr.f32.mxu0 0.0
    %332 = vmatmul.mubr.f32.gmra.mxu0 %v183
    %v333 = vpop.f32.mrf.mxu0
    %v334 = vadd.f32 0.0, %v333
    %v335 = vpop.f32.mrf.mxu0
    %336 = vmatprep.mubr.f32.mxu0 0.0
    %337 = vmatmul.mubr.f32.gmra.mxu0 %v184
    %v338 = vpop.f32.mrf.mxu0
    %v339 = vadd.f32 0.0, %v338
    %v340 = vpop.f32.mrf.mxu0
    %341 = vmatprep.mubr.f32.mxu0 0.0
    %342 = vmatmul.mubr.f32.gmra.mxu0 %v185
    %v343 = vpop.f32.mrf.mxu0
    %v344 = vadd.f32 0.0, %v343
    %v345 = vpop.f32.mrf.mxu0
    %346 = vmatprep.mubr.f32.mxu0 0.0
    %347 = vmatmul.mubr.f32.gmra.mxu0 %v186
    %v348 = vpop.f32.mrf.mxu0
    %v349 = vadd.f32 0.0, %v348
    %v350 = vpop.f32.mrf.mxu0
    %351 = vmatprep.mubr.f32.mxu0 0.0
    %352 = vmatmul.mubr.f32.gmra.mxu0 %v187
    %v353 = vpop.f32.mrf.mxu0
    %v354 = vadd.f32 0.0, %v353
    %v355 = vpop.f32.mrf.mxu0
    %356 = vmatprep.mubr.f32.mxu0 0.0
    %357 = vmatmul.mubr.f32.gmra.mxu0 %v188
    %v358 = vpop.f32.mrf.mxu0
    %v359 = vadd.f32 0.0, %v358
    %v360 = vpop.f32.mrf.mxu0
    %361 = vmatprep.mubr.f32.mxu0 0.0
    %362 = vmatmul.mubr.f32.gmra.mxu0 %v189
    %v363 = vpop.f32.mrf.mxu0
    %v364 = vadd.f32 0.0, %v363
    %v365 = vpop.f32.mrf.mxu0
    %366 = vmatprep.mubr.f32.mxu0 0.0
    %367 = vmatmul.mubr.f32.gmra.mxu0 %v190
    %v368 = vpop.f32.mrf.mxu0
    %v369 = vadd.f32 0.0, %v368
    %v370 = vpop.f32.mrf.mxu0
    %371 = vmatprep.mubr.f32.mxu0 0.0
    %372 = vmatmul.mubr.f32.gmra.mxu0 %v191
    %v373 = vpop.f32.mrf.mxu0
    %v374 = vadd.f32 0.0, %v373
    %v375 = vpop.f32.mrf.mxu0
    %376 = vmatprep.mubr.f32.mxu0 0.0
    %377 = vmatmul.mubr.f32.gmra.mxu0 %v192
    %v378 = vpop.f32.mrf.mxu0
    %v379 = vadd.f32 0.0, %v378
    %v380 = vpop.f32.mrf.mxu0
    %381 = vmatprep.mubr.f32.mxu0 0.0
    %382 = vmatmul.mubr.f32.gmra.mxu0 %v193
    %v383 = vpop.f32.mrf.mxu0
    %v384 = vadd.f32 0.0, %v383
    %v385 = vpop.f32.mrf.mxu0
    %386 = vmatprep.mubr.f32.mxu0 0.0
    %387 = vmatmul.mubr.f32.gmra.mxu0 %v194
    %v388 = vpop.f32.mrf.mxu0
    %v389 = vadd.f32 0.0, %v388
    %v390 = vpop.f32.mrf.mxu0
    %391 = vmatprep.mubr.f32.mxu0 0.0
    %392 = vmatmul.mubr.f32.gmra.mxu0 %v195
    %v393 = vpop.f32.mrf.mxu0
    %v394 = vadd.f32 0.0, %v393
    %v395 = vpop.f32.mrf.mxu0
    %396 = vmatprep.mubr.f32.mxu0 0.0
    %397 = vmatmul.mubr.f32.gmra.mxu0 %v196
    %v398 = vpop.f32.mrf.mxu0
    %v399 = vadd.f32 0.0, %v398
    %v400 = vpop.f32.mrf.mxu0
    %401 = vmatprep.mubr.f32.mxu0 0.0
    %402 = vmatmul.mubr.f32.gmra.mxu0 %v197
    %v403 = vpop.f32.mrf.mxu0
    %v404 = vadd.f32 0.0, %v403
    %v405 = vpop.f32.mrf.mxu0
    %406 = vmatprep.mubr.f32.mxu0 0.0
    %407 = vmatmul.mubr.f32.gmra.mxu0 %v198
    %v408 = vpop.f32.mrf.mxu0
    %v409 = vadd.f32 0.0, %v408
    %v410 = vpop.f32.mrf.mxu0
    %411 = vmatprep.mubr.f32.mxu0 0.0
    %412 = vmatmul.mubr.f32.gmra.mxu0 %v199
    %v413 = vpop.f32.mrf.mxu0
    %v414 = vadd.f32 0.0, %v413
    %v415 = vpop.f32.mrf.mxu0
    %416 = vmatprep.mubr.f32.mxu0 0.0
    %417 = vmatmul.mubr.f32.gmra.mxu0 %v200
    %v418 = vpop.f32.mrf.mxu0
    %v419 = vadd.f32 0.0, %v418
    %v420 = vpop.f32.mrf.mxu0
    %421 = vmatprep.mubr.f32.mxu0 0.0
    %422 = vmatmul.mubr.f32.gmra.mxu0 %v201
    %v423 = vpop.f32.mrf.mxu0
    %v424 = vadd.f32 0.0, %v423
    %v425 = vpop.f32.mrf.mxu0
    %426 = vmatprep.mubr.f32.mxu0 0.0
    %427 = vmatmul.mubr.f32.gmra.mxu0 %v202
    %v428 = vpop.f32.mrf.mxu0
    %v429 = vadd.f32 0.0, %v428
    %v430 = vpop.f32.mrf.mxu0
    %431 = vmatprep.mubr.f32.mxu0 0.0
    %432 = vmatmul.mubr.f32.gmra.mxu0 %v203
    %v433 = vpop.f32.mrf.mxu0
    %v434 = vadd.f32 0.0, %v433
    %v435 = vpop.f32.mrf.mxu0
    %436 = vmatprep.mubr.f32.mxu0 0.0
    %437 = vmatmul.mubr.f32.gmra.mxu0 %v204
    %v438 = vpop.f32.mrf.mxu0
    %v439 = vadd.f32 0.0, %v438
    %v440 = vpop.f32.mrf.mxu0
    %441 = vmatprep.mubr.f32.mxu0 0.0
    %442 = vmatmul.mubr.f32.gmra.mxu0 %v205
    %v443 = vpop.f32.mrf.mxu0
    %v444 = vadd.f32 0.0, %v443
    %v445 = vpop.f32.mrf.mxu0
    %446 = vdwg.mxu0
    %447 = vst [vmem:[#allocation2] sm:$0xff] %v289
    %448 = vst [vmem:[#allocation2 + $0x8] sm:$0xff] %v294
    %449 = vst [vmem:[#allocation2 + $0x10] sm:$0xff] %v299
    %450 = vst [vmem:[#allocation2 + $0x18] sm:$0xff] %v304
    %451 = vst [vmem:[#allocation2 + $0x20] sm:$0xff] %v309
    %452 = vst [vmem:[#allocation2 + $0x28] sm:$0xff] %v314
    %453 = vst [vmem:[#allocation2 + $0x30] sm:$0xff] %v319
    %454 = vst [vmem:[#allocation2 + $0x38] sm:$0xff] %v324
    %455 = vst [vmem:[#allocation2 + $0x40] sm:$0xff] %v329
    %456 = vst [vmem:[#allocation2 + $0x48] sm:$0xff] %v334
    %457 = vst [vmem:[#allocation2 + $0x50] sm:$0xff] %v339
    %458 = vst [vmem:[#allocation2 + $0x58] sm:$0xff] %v344
    %459 = vst [vmem:[#allocation2 + $0x60] sm:$0xff] %v349
    %460 = vst [vmem:[#allocation2 + $0x68] sm:$0xff] %v354
    %461 = vst [vmem:[#allocation2 + $0x70] sm:$0xff] %v359
    %462 = vst [vmem:[#allocation2 + $0x78] sm:$0xff] %v364
    %463 = vst [vmem:[#allocation2 + $0x80] sm:$0xff] %v369
    %464 = vst [vmem:[#allocation2 + $0x88] sm:$0xff] %v374
    %465 = vst [vmem:[#allocation2 + $0x90] sm:$0xff] %v379
    %466 = vst [vmem:[#allocation2 + $0x98] sm:$0xff] %v384
    %467 = vst [vmem:[#allocation2 + $0xa0] sm:$0xff] %v389
    %468 = vst [vmem:[#allocation2 + $0xa8] sm:$0xff] %v394
    %469 = vst [vmem:[#allocation2 + $0xb0] sm:$0xff] %v399
    %470 = vst [vmem:[#allocation2 + $0xb8] sm:$0xff] %v404
    %471 = vst [vmem:[#allocation2 + $0xc0] sm:$0xff] %v409
    %472 = vst [vmem:[#allocation2 + $0xc8] sm:$0xff] %v414
    %473 = vst [vmem:[#allocation2 + $0xd0] sm:$0xff] %v419
    %474 = vst [vmem:[#allocation2 + $0xd8] sm:$0xff] %v424
    %475 = vst [vmem:[#allocation2 + $0xe0] sm:$0xff] %v429
    %476 = vst [vmem:[#allocation2 + $0xe8] sm:$0xff] %v434
    %477 = vst [vmem:[#allocation2 + $0xf0] sm:$0xff] %v439
    %478 = vst [vmem:[#allocation2 + $0xf8] sm:$0xff] %v444
    // Predicated region
    $region10: #{tpu_custom_call.1} parent=1 // pred_check
      _
    $region11: #{tpu_custom_call.1} parent=1 // pred_check_branch
      %480 = sbr.rel (0) target = $region13
    $region12: #{tpu_custom_call.1} parent=1 // pred_region
      %s482 = ssub.s32 4096, 4096
      %483 = vsyncadd [#allocation3], %s482
      %s484 = sshll.u32 [#allocation2], 4
      %s485 = int_to_ptr.vmem [resolvable:$true] %s484
      %490 = dma.vmem_to_hbm [thread:$0]  %s485, 4096, %s2, [#allocation3], 128, 128, 8
    $region13: #{tpu_custom_call.1} parent=1 // pred_fallthru
      _
    // Predicated region
    $region14: #{tpu_custom_call.1} parent=1 // pred_check
      _
    $region15: #{tpu_custom_call.1} parent=1 // pred_check_branch
      %492 = sbr.rel (0) target = $region17
    $region16: #{tpu_custom_call.1} parent=1 // pred_region
      %493 = dma.done [#allocation3], 4096
    $region17: #{tpu_custom_call.1} parent=1 // pred_fallthru
      _
    %494 = vsyncpa [#allocation3], 1

</llo_original>
